<compile_context>
chip_gen: v6e
topology: v6e:2x2x1
jax: 0.10.0
libtpu: 0.0.40
codegen_flags: <defaults>
</compile_context>

<pallas_src>
import jax
import jax.numpy as jnp
from jax.experimental import pallas as pl
from jax.experimental.pallas import tpu as pltpu


def _concat_pool_kernel(x_ref, out_ref):
    # x_ref: (TR, H*W) tile in VMEM (input dtype); out_ref: (2, TR) tile.
    x = x_ref[...]
    inv_hw = 1.0 / x.shape[-1]
    xf = x.astype(jnp.float32)
    # Mean: accumulate in f32 regardless of input dtype.
    avg = jnp.sum(xf, axis=-1, keepdims=True) * inv_hw          # (TR, 1) f32
    # Max in f32 (exact for f32/bf16 inputs; widened anyway on v5e's VPU).
    mx = jnp.max(xf, axis=-1, keepdims=True)                    # (TR, 1) f32
    # Lane-dense writes: transpose (TR, 1) -> (1, TR) on the idle XLU.
    out_ref[0:1, :] = avg.T.astype(out_ref.dtype)               # row 0 = avg
    out_ref[1:2, :] = mx.T.astype(out_ref.dtype)                # row 1 = max


def _pick_target_block_bytes():
    """Per-generation input-block budget (double-buffered by the pipeline)."""
    target = 8 * 1024 * 1024                      # v5e / v6e default (~16 MiB 2-buffered)
    try:
        info = pltpu.get_tpu_info()
        vmem = getattr(info, "vmem_capacity_bytes", None)
        # 64 MiB VMEM per TensorCore -> v7x: per-step overhead is proportionally
        # larger at 3.2 TB/s HBM, so use bigger blocks (24 MiB double-buffered).
        if vmem is not None and vmem <= 64 * 1024 * 1024:
            target = 12 * 1024 * 1024
    except Exception:
        pass
    return target


def _choose_row_tile(rows, hw, itemsize, target_bytes):
    """Row tile: multiple of 128 (output lane dim) sized to ~target_bytes of input."""
    hw_pad = ((hw + 127) // 128) * 128            # last dim pads to full 128-lane vregs
    bytes_per_row = max(hw_pad * itemsize, 1)
    tr = target_bytes // bytes_per_row
    tr = max(128, (tr // 128) * 128)
    if tr >= rows:
        return rows                               # single block along rows (full dim legal)
    return tr


def adaptive_concat_pool(x, row_tile=None):
    """AdaptiveConcatPool(pool=1) forward: (N, C, H, W) -> (N, 2C, 1, 1)."""
    N, C, H, W = x.shape
    rows = N * C
    hw = H * W
    itemsize = jnp.dtype(x.dtype).itemsize

    xr = x.reshape(rows, hw)                      # free, contiguous reshape

    if row_tile is not None:
        tr = rows if row_tile >= rows else row_tile   # caller: multiple of 128 if < rows
    else:
        tr = _choose_row_tile(rows, hw, itemsize, _pick_target_block_bytes())
    grid = (pl.cdiv(rows, tr),)

    fused = pl.pallas_call(
        _concat_pool_kernel,
        out_shape=jax.ShapeDtypeStruct((2, rows), x.dtype),
        grid=grid,
        in_specs=[pl.BlockSpec((tr, hw), lambda i: (i, 0))],
        out_specs=pl.BlockSpec((2, tr), lambda i: (0, i)),
        compiler_params=pltpu.CompilerParams(
            dimension_semantics=("parallel",),
            vmem_limit_bytes=32 * 1024 * 1024,
        ),
        cost_estimate=pl.CostEstimate(
            flops=2 * rows * hw,
            transcendentals=0,
            bytes_accessed=rows * hw * itemsize + 2 * rows * itemsize,
        ),
    )(xr)

    # fused[0] = avg per (n, c) row, fused[1] = max. Restore PyTorch channel order:
    # first C channels avg, next C channels max.
    out = fused.reshape(2, N, C)
    out = jnp.swapaxes(out, 0, 1)                 # (N, 2, C) -- tiny tensor, negligible
    return out.reshape(N, 2 * C, 1, 1)


def _reference(x):
    avg = jnp.mean(x.astype(jnp.float32), axis=(2, 3), keepdims=True).astype(x.dtype)
    mx = jnp.max(x, axis=(2, 3), keepdims=True)
    return jnp.concatenate([avg, mx], axis=1)


if __name__ == "__main__":
    # 1) Small shape consistent with the module spec (single block, hw = 256).
    x = jax.random.normal(jax.random.PRNGKey(0), (2, 4, 16, 16), dtype=jnp.float32)
    y = adaptive_concat_pool(x)
    jax.block_until_ready(y)
    ref = _reference(x)
    assert y.shape == (2, 8, 1, 1), y.shape
    assert jnp.allclose(y, ref, atol=1e-5, rtol=1e-5), "f32 mismatch vs reference"

    # 2) Multi-step grid with a partial last row block and non-128-multiple H*W:
    #    rows = 320, tile = 128 -> 3 grid steps (last covers 64 rows); hw = 49.
    x2 = jax.random.normal(jax.random.PRNGKey(1), (2, 160, 7, 7), dtype=jnp.float32)
    y2 = adaptive_concat_pool(x2, row_tile=128)
    jax.block_until_ready(y2)
    ref2 = _reference(x2)
    assert y2.shape == (2, 320, 1, 1), y2.shape
    assert jnp.allclose(y2, ref2, atol=1e-5, rtol=1e-5), "tiled f32 mismatch vs reference"

    # 3) bf16 path with non-128-multiple hw and a partial last block
    #    (rows = 272, tile = 128 -> 3 steps, last covers 16 rows; hw = 49).
    x3 = jax.random.normal(jax.random.PRNGKey(2), (2, 136, 7, 7), dtype=jnp.bfloat16)
    y3 = adaptive_concat_pool(x3, row_tile=128)
    jax.block_until_ready(y3)
    ref3 = _reference(x3)
    assert y3.shape == (2, 272, 1, 1), y3.shape
    assert jnp.allclose(
        y3.astype(jnp.float32), ref3.astype(jnp.float32), atol=1e-2, rtol=2e-2
    ), "bf16 mismatch vs reference"

    print("KERNEL_OK")
</pallas_src>

<mosaic_0001>
module attributes {stable_mosaic.version = 11 : i64} {
  func.func @_concat_pool_kernel(%arg0: i32, %arg1: memref<8x256xf32, #tpu.memory_space<vmem>>, %arg2: memref<2x8xf32, #tpu.memory_space<vmem>>) attributes {dimension_semantics = [#tpu.dimension_semantics<parallel>], iteration_bounds = array<i64: 1>, scalar_prefetch = 0 : i64, scratch_operands = 0 : i64, tpu.core_type = #tpu.core_type<tc>, window_params = [{transform_indices = @transform_0, window_bounds = array<i64: 8, 256>}, {transform_indices = @transform_1, window_bounds = array<i64: 2, 8>}]} {
    %c0 = arith.constant 0 : index
    %c0_0 = arith.constant 0 : index
    %0 = vector.load %arg1[%c0, %c0_0] : memref<8x256xf32, #tpu.memory_space<vmem>>, vector<8x256xf32>
    %cst = arith.constant dense<0.000000e+00> : vector<8xf32>
    %1 = vector.multi_reduction <add>, %0, %cst [1] : vector<8x256xf32> to vector<8xf32>
    %2 = vector.shape_cast %1 : vector<8xf32> to vector<8x1xf32>
    %cst_1 = arith.constant 3.906250e-03 : f32
    %3 = vector.broadcast %cst_1 : f32 to vector<8x1xf32>
    %4 = arith.mulf %2, %3 : vector<8x1xf32>
    %cst_2 = arith.constant dense<0xFF800000> : vector<8xf32>
    %5 = vector.multi_reduction <maximumf>, %0, %cst_2 [1] : vector<8x256xf32> to vector<8xf32>
    %6 = vector.shape_cast %5 : vector<8xf32> to vector<8x1xf32>
    %7 = tpu.transpose %4, [1, 0] : vector<8x1xf32> -> vector<1x8xf32>
    %c0_3 = arith.constant 0 : index
    %c0_4 = arith.constant 0 : index
    %8 = vector.load %arg2[%c0_3, %c0_4] : memref<2x8xf32, #tpu.memory_space<vmem>>, vector<1x8xf32>
    tpu.vector_store %arg2[%c0_3, %c0_4], %7 {strides = array<i32>} : memref<2x8xf32, #tpu.memory_space<vmem>>, vector<1x8xf32>,
    %9 = tpu.transpose %6, [1, 0] : vector<8x1xf32> -> vector<1x8xf32>
    %c1 = arith.constant 1 : index
    %c0_5 = arith.constant 0 : index
    %10 = vector.load %arg2[%c1, %c0_5] : memref<2x8xf32, #tpu.memory_space<vmem>>, vector<1x8xf32>
    tpu.vector_store %arg2[%c1, %c0_5], %9 {strides = array<i32>} : memref<2x8xf32, #tpu.memory_space<vmem>>, vector<1x8xf32>,
    return
  }
  func.func @transform_0(%arg0: i32) -> (i32, i32) {
    %c0_i32 = arith.constant 0 : i32
    %c0_i32_0 = arith.constant 0 : i32
    return %arg0, %c0_i32 : i32, i32
  }
  func.func @transform_1(%arg0: i32) -> (i32, i32) {
    %c0_i32 = arith.constant 0 : i32
    %c0_i32_0 = arith.constant 0 : i32
    return %c0_i32, %arg0 : i32, i32
  }
}

</mosaic_0001>

<llo_original>
// kernel: tpu_custom_call.1
$region0: #{tpu_custom_call.1}
  #allocation0 [shape = 'u32[]', space=smem, size = 0x4, offset = 0x4, fixed_abs, tag = 'smem constant byte address 0x4 - core index']
  #allocation1 [shape = 'u32[144,128]{1,0:T(1,128)}', space=vmem, size = 0x12000, scoped, tag = 'internal scratch']
  %s0 = inlined_call_operand.hbm [shape: f32[8,256], index: 0, kind: input, shape index: {}]
  %s1 = inlined_call_operand.hbm [shape: f32[2,8], index: 1, kind: output, shape index: {}]
  %s2 = sld [smem:[#allocation0]]
  $region18: #{tpu_custom_call.1} parent=0
    _
  %s4 = ssub.s32 1, %s2
  %s5 = scalar_select 0, %s4, %s2
  $region1: #{tpu_custom_call.1} parent=0
    #allocation2 [shape = 'u8[8192]{0}', space=vmem, size = 0x2000, scoped, tag = 'input window, operand 0, single buffered']
    #allocation3 [shape = 's32[1]{0}', space=sflag, size = 0x4, scoped, tag = 'scoped memory for tpu_custom_call.1']
    #allocation4 [shape = 's32[1]{0}', space=sflag, size = 0x4, scoped, tag = 'scoped memory for tpu_custom_call.1']
    #allocation5 [shape = 'u8[1024]{0}', space=vmem, size = 0x400, scoped, tag = 'output window, operand 0, single buffered']
    %6 = vsyncpa [#allocation3], 0
    %7 = vsyncpa [#allocation4], 0
    // Predicated region
    $region2: #{tpu_custom_call.1} parent=1 // pred_check
      _
    $region3: #{tpu_custom_call.1} parent=1 // pred_check_branch
      %9 = sbr.rel (0) target = $region5
    $region4: #{tpu_custom_call.1} parent=1 // pred_region
      %s11 = ssub.s32 256, 256
      %12 = vsyncadd [#allocation3], %s11
      %s14 = sshll.u32 [#allocation2], 4
      %s15 = int_to_ptr.vmem [resolvable:$true] %s14
      %17 = dma.hbm_to_vmem [thread:$0]  %s0, 256, %s15, [#allocation3]
    $region5: #{tpu_custom_call.1} parent=1 // pred_fallthru
      _
    // Predicated region
    $region6: #{tpu_custom_call.1} parent=1 // pred_check
      _
    $region7: #{tpu_custom_call.1} parent=1 // pred_check_branch
      %19 = sbr.rel (0) target = $region9
    $region8: #{tpu_custom_call.1} parent=1 // pred_region
      %20 = dma.done [#allocation3], 256
    $region9: #{tpu_custom_call.1} parent=1 // pred_fallthru
      _
    %v21 = vld [vmem:[#allocation2] sm:$0xff]
    %v22 = vld [vmem:[#allocation2 + $0x8] sm:$0xff]
    %v23 = vadd.f32 %v21, %v22
    %24 = vadd.xlane.f32.xlu0 %v23
    %v25 = vpop.xlane.xlu0 %24
    %v26 = vmul.f32 %v25, 0.00390625
    %v27 = vmax.f32 %v21, %v22
    %28 = vmax.xlane.f32.xlu0 %v27
    %v29 = vpop.xlane.xlu0 %28
    %30 = vxpose.xlu0.b32.start [1/16] %v26, 128
    %31 = vxpose.xlu0.b32.cont [2/16] 0.0, 128
    %32 = vxpose.xlu0.b32.cont [3/16] 0.0, 128
    %33 = vxpose.xlu0.b32.cont [4/16] 0.0, 128
    %34 = vxpose.xlu0.b32.cont [5/16] 0.0, 128
    %35 = vxpose.xlu0.b32.cont [6/16] 0.0, 128
    %36 = vxpose.xlu0.b32.cont [7/16] 0.0, 128
    %37 = vxpose.xlu0.b32.cont [8/16] 0.0, 128
    %38 = vxpose.xlu0.b32.cont [9/16] 0.0, 128
    %39 = vxpose.xlu0.b32.cont [10/16] 0.0, 128
    %40 = vxpose.xlu0.b32.cont [11/16] 0.0, 128
    %41 = vxpose.xlu0.b32.cont [12/16] 0.0, 128
    %42 = vxpose.xlu0.b32.cont [13/16] 0.0, 128
    %43 = vxpose.xlu0.b32.cont [14/16] 0.0, 128
    %44 = vxpose.xlu0.b32.cont [15/16] 0.0, 128
    %45 = vxpose.xlu0.b32.end [16/16] 0.0, 128
    %v46 = vpop.trf.xlu0
    %v47 = vpop.trf.xlu0
    %v48 = vpop.trf.xlu0
    %v49 = vpop.trf.xlu0
    %v50 = vpop.trf.xlu0
    %v51 = vpop.trf.xlu0
    %v52 = vpop.trf.xlu0
    %v53 = vpop.trf.xlu0
    %v54 = vpop.trf.xlu0
    %v55 = vpop.trf.xlu0
    %v56 = vpop.trf.xlu0
    %v57 = vpop.trf.xlu0
    %v58 = vpop.trf.xlu0
    %v59 = vpop.trf.xlu0
    %v60 = vpop.trf.xlu0
    %v61 = vpop.trf.xlu0
    %vm62 = vcmask 57344
    %63 = vst.msk [vmem:[#allocation5] sm:$0x1] %vm62, %v46
    %64 = vxpose.xlu0.b32.start [1/16] %v29, 128
    %65 = vxpose.xlu0.b32.cont [2/16] 0.0, 128
    %66 = vxpose.xlu0.b32.cont [3/16] 0.0, 128
    %67 = vxpose.xlu0.b32.cont [4/16] 0.0, 128
    %68 = vxpose.xlu0.b32.cont [5/16] 0.0, 128
    %69 = vxpose.xlu0.b32.cont [6/16] 0.0, 128
    %70 = vxpose.xlu0.b32.cont [7/16] 0.0, 128
    %71 = vxpose.xlu0.b32.cont [8/16] 0.0, 128
    %72 = vxpose.xlu0.b32.cont [9/16] 0.0, 128
    %73 = vxpose.xlu0.b32.cont [10/16] 0.0, 128
    %74 = vxpose.xlu0.b32.cont [11/16] 0.0, 128
    %75 = vxpose.xlu0.b32.cont [12/16] 0.0, 128
    %76 = vxpose.xlu0.b32.cont [13/16] 0.0, 128
    %77 = vxpose.xlu0.b32.cont [14/16] 0.0, 128
    %78 = vxpose.xlu0.b32.cont [15/16] 0.0, 128
    %79 = vxpose.xlu0.b32.end [16/16] 0.0, 128
    %v80 = vpop.trf.xlu0
    %v81 = vpop.trf.xlu0
    %v82 = vpop.trf.xlu0
    %v83 = vpop.trf.xlu0
    %v84 = vpop.trf.xlu0
    %v85 = vpop.trf.xlu0
    %v86 = vpop.trf.xlu0
    %v87 = vpop.trf.xlu0
    %v88 = vpop.trf.xlu0
    %v89 = vpop.trf.xlu0
    %v90 = vpop.trf.xlu0
    %v91 = vpop.trf.xlu0
    %v92 = vpop.trf.xlu0
    %v93 = vpop.trf.xlu0
    %v94 = vpop.trf.xlu0
    %v95 = vpop.trf.xlu0
    %96 = vst.msk [vmem:[#allocation5 + $0x1] sm:$0x1] %vm62, %v80
    // Predicated region
    $region10: #{tpu_custom_call.1} parent=1 // pred_check
      _
    $region11: #{tpu_custom_call.1} parent=1 // pred_check_branch
      %98 = sbr.rel (0) target = $region13
    $region12: #{tpu_custom_call.1} parent=1 // pred_region
      %s100 = ssub.s32 32, 32
      %101 = vsyncadd [#allocation4], %s100
      %s103 = sshll.u32 [#allocation5], 4
      %s104 = int_to_ptr.vmem [resolvable:$true] %s103
      %106 = dma.vmem_to_hbm [thread:$0]  %s104, 32, %s1, [#allocation4]
    $region13: #{tpu_custom_call.1} parent=1 // pred_fallthru
      _
    // Predicated region
    $region14: #{tpu_custom_call.1} parent=1 // pred_check
      _
    $region15: #{tpu_custom_call.1} parent=1 // pred_check_branch
      %108 = sbr.rel (0) target = $region17
    $region16: #{tpu_custom_call.1} parent=1 // pred_region
      %109 = dma.done [#allocation4], 32
    $region17: #{tpu_custom_call.1} parent=1 // pred_fallthru
      _
    %110 = vsyncpa [#allocation3], 1
    %111 = vsyncpa [#allocation4], 1

</llo_original>
